<compile_context>
chip_gen: v7x
topology: tpu7x:2x2x1
jax: 0.10.0
libtpu: 0.0.40
codegen_flags: <defaults>
</compile_context>

<pallas_src>
import functools
import math

import jax
import jax.numpy as jnp
from jax import lax
from jax.experimental import pallas as pl
from jax.experimental.pallas import tpu as pltpu


# --------------------------------------------------------------------------- #
# Kernel
# --------------------------------------------------------------------------- #
def _contrastive_loss_kernel(a_ref, p_ref, o_ref, acc_ref, *,
                             scale, eps, rows_valid, k, d,
                             tile_rows, tiles_per_split, need_mask):
    """One (tile_rows, k*d) tile of anchors/positives.

    Each tile row holds `k` original feature rows of width `d` packed along the
    lane axis (k == 1 when no folding was applied). Per-original-row cosine
    similarities are summed into a per-row accumulator; the finalize step
    reduces it once and applies the -1/(T*N) scale.
    """
    i = pl.program_id(1)  # position along the (sequential) batch-tile axis

    # Zero the running per-row sums at the start of each split's sweep.
    @pl.when(i == 0)
    def _():
        acc_ref[...] = jnp.zeros_like(acc_ref)

    # Native-dtype tiles, upcast to f32 in-register (free under the DMA).
    a = a_ref[...].astype(jnp.float32)          # (tile_rows, k*d)
    p = p_ref[...].astype(jnp.float32)

    ap = a * p
    aa = a * a
    pp = p * p

    eps2 = eps * eps
    sim = None
    # k segmented per-original-row reductions over static lane slices.
    # (k is a small static Python int; the loop unrolls at trace time.)
    for j in range(k):
        sl = slice(j * d, (j + 1) * d)
        dot = jnp.sum(ap[:, sl], axis=1, keepdims=True)   # (tile_rows, 1)
        na2 = jnp.sum(aa[:, sl], axis=1, keepdims=True)
        np2 = jnp.sum(pp[:, sl], axis=1, keepdims=True)
        # torch-style clamp on the product of norms, EUP rsqrt instead of
        # sqrt + divide:  sim = <a,p> / max(||a||*||p||, eps)
        s_j = dot * lax.rsqrt(jnp.maximum(na2 * np2, eps2))
        sim = s_j if sim is None else sim + s_j

    # Mask ragged tail rows (only emitted when the last tile is partial).
    if need_mask:
        c = pl.program_id(0)
        row = ((c * tiles_per_split + i) * tile_rows
               + lax.broadcasted_iota(jnp.int32, sim.shape, 0))
        sim = jnp.where(row < rows_valid, sim, 0.0)

    # Deferred reduction: elementwise accumulate; reduce once at finalize.
    acc_ref[...] += sim

    # Finalize this split's partial: single sublane reduce + scale + store.
    @pl.when(i == pl.num_programs(1) - 1)
    def _():
        o_ref[...] = jnp.sum(acc_ref[...], axis=(0, 1), keepdims=True) * scale


# --------------------------------------------------------------------------- #
# Sizing helpers
# --------------------------------------------------------------------------- #
def _vmem_limit_bytes():
    """Generation-aware scoped-VMEM limit to request from the compiler."""
    phys = None
    try:
        info = pltpu.get_tpu_info()
        for name in ("vmem_capacity_bytes", "vmem_bytes", "vmem_size_bytes"):
            phys = getattr(info, name, None)
            if phys:
                break
    except Exception:
        phys = None
    if not phys:
        # Conservative fallback: v7x has the smallest physical VMEM (64 MiB).
        phys = 64 * 1024 * 1024
    # ~3/4 of physical, capped at 96 MiB (plenty for a streaming kernel),
    # never below the smallest default scoped limit.
    limit = min(int(phys) * 3 // 4, 96 * 1024 * 1024)
    return max(limit, 16 * 1024 * 1024)


def _pick_tile_rows(n_rows, width, itemsize, vmem_limit):
    """Rows per tile, bounded by a VMEM budget that counts everything live.

    Per element of a tile we hold:
      * 2 inputs x 2 pipeline buffers in native dtype  -> 4 * itemsize bytes
      * ~4 f32-wide in-kernel intermediates (a/p upcasts + products) -> 16 B
    and we only spend half of the scoped limit on the tile working set.
    """
    sublane = max(8, 32 // max(1, itemsize))        # 8 f32 / 16 bf16 / 32 int8
    lanes = ((width + 127) // 128) * 128            # lane-padded VMEM width
    bytes_per_row = lanes * (4 * itemsize + 16)
    budget = vmem_limit // 2
    rows = budget // max(1, bytes_per_row)
    rows = min(rows, 4096)                          # raised cap (was 1024)
    rows = max(sublane, (rows // sublane) * sublane)
    if n_rows <= rows:
        return n_rows                               # one full-extent tile
    return rows


# --------------------------------------------------------------------------- #
# Public wrapper
# --------------------------------------------------------------------------- #
def contrastive_loss(anchor_features, positive_features, temperature=0.5,
                     eps=1e-8):
    """Pallas TPU implementation of ContrastiveLoss.forward.

    anchor_features, positive_features: (N, D) arrays. Any float dtype; bf16
    inputs are recommended on v6e/v7x (the kernel is HBM-bound, casts to f32
    in-register). Returns a scalar float32.
    """
    assert anchor_features.shape == positive_features.shape
    assert anchor_features.ndim == 2
    n, d = anchor_features.shape
    itemsize = jnp.dtype(anchor_features.dtype).itemsize

    # --- Lane-dense folding for small / non-128-multiple D -----------------
    k = 1
    if d % 128 != 0:
        kk = 128 // math.gcd(d, 128)
        if 1 < kk <= 16 and n % kk == 0:
            k = kk
    folded_n = n // k
    width = k * d
    if k > 1:
        # Row-major contiguous -> free reshape (no HBM copy).
        anchor_features = anchor_features.reshape(folded_n, width)
        positive_features = positive_features.reshape(folded_n, width)

    # --- Tiling / grid ------------------------------------------------------
    vmem_limit = _vmem_limit_bytes()
    tile_rows = _pick_tile_rows(folded_n, width, itemsize, vmem_limit)
    num_tiles = pl.cdiv(folded_n, tile_rows)
    # 2-way "parallel" split feeds both TensorCores on v7x (sequential and
    # harmless on single-core v5e/v6e). Only when the tile count splits evenly.
    num_splits = 2 if (num_tiles >= 2 and num_tiles % 2 == 0) else 1
    tiles_per_split = num_tiles // num_splits
    need_mask = (folded_n % tile_rows) != 0

    kernel = functools.partial(
        _contrastive_loss_kernel,
        scale=-1.0 / (float(temperature) * n),   # folds 1/T and 1/N together
        eps=float(eps),
        rows_valid=folded_n,
        k=k,
        d=d,
        tile_rows=tile_rows,
        tiles_per_split=tiles_per_split,
        need_mask=need_mask,
    )

    in_map = lambda c, i: (c * tiles_per_split + i, 0)  # noqa: E731

    partials = pl.pallas_call(
        kernel,
        out_shape=jax.ShapeDtypeStruct((num_splits, 1), jnp.float32),
        grid_spec=pltpu.PrefetchScalarGridSpec(
            num_scalar_prefetch=0,
            grid=(num_splits, tiles_per_split),
            in_specs=[
                pl.BlockSpec((tile_rows, width), in_map),
                pl.BlockSpec((tile_rows, width), in_map),
            ],
            out_specs=pl.BlockSpec((1, 1), lambda c, i: (c, 0)),
            scratch_shapes=[pltpu.VMEM((tile_rows, 1), jnp.float32)],
        ),
        compiler_params=pltpu.CompilerParams(
            dimension_semantics=("parallel", "arbitrary"),
            vmem_limit_bytes=int(vmem_limit),
        ),
        cost_estimate=pl.CostEstimate(
            flops=8 * n * d,
            transcendentals=n,
            bytes_accessed=2 * n * d * itemsize + 8 * num_splits,
        ),
    )(anchor_features, positive_features)

    # Sum the per-TensorCore partial means (already scaled by -1/(T*N)).
    return jnp.sum(partials)


# --------------------------------------------------------------------------- #
# Pure-JAX reference (mirrors the PyTorch module)
# --------------------------------------------------------------------------- #
def _reference(anchor, positive, temperature=0.5, eps=1e-8):
    a = anchor.astype(jnp.float32)
    p = positive.astype(jnp.float32)
    dot = jnp.sum(a * p, axis=1)
    na = jnp.sqrt(jnp.sum(a * a, axis=1))
    npn = jnp.sqrt(jnp.sum(p * p, axis=1))
    sim = dot / jnp.maximum(na * npn, eps)
    loss = -jnp.log(jnp.exp(sim / temperature))
    return jnp.mean(loss)


if __name__ == "__main__":
    key = jax.random.PRNGKey(0)
    k_a, k_p, k_a2, k_p2 = jax.random.split(key, 4)

    # Small shape consistent with the module (batch of feature vectors).
    # N=8, D=32 exercises the lane-dense fold path ((8,32) -> (2,128)).
    batch, hidden = 8, 32
    anchor = jax.random.normal(k_a, (batch, hidden), dtype=jnp.float32)
    positive = jax.random.normal(k_p, (batch, hidden), dtype=jnp.float32)

    out = jax.block_until_ready(contrastive_loss(anchor, positive,
                                                 temperature=0.5))
    ref = _reference(anchor, positive, temperature=0.5)
    assert jnp.allclose(out, ref, rtol=1e-4, atol=1e-5), (out, ref)

    # Non-foldable batch (N=13 doesn't divide by 4) -> plain k==1 path.
    batch2 = 13
    anchor2 = jax.random.normal(k_a2, (batch2, hidden), dtype=jnp.float32)
    positive2 = jax.random.normal(k_p2, (batch2, hidden), dtype=jnp.float32)
    out2 = jax.block_until_ready(contrastive_loss(anchor2, positive2,
                                                  temperature=0.5))
    ref2 = _reference(anchor2, positive2, temperature=0.5)
    assert jnp.allclose(out2, ref2, rtol=1e-4, atol=1e-5), (out2, ref2)

    print("KERNEL_OK")
</pallas_src>

<mosaic_0001>
module attributes {stable_mosaic.version = 11 : i64} {
  func.func @_contrastive_loss_kernel(%arg0: i32, %arg1: i32, %arg2: memref<2x128xf32, #tpu.memory_space<vmem>>, %arg3: memref<2x128xf32, #tpu.memory_space<vmem>>, %arg4: memref<1x1xf32, #tpu.memory_space<vmem>>, %arg5: memref<2x1xf32, #tpu.memory_space<vmem>>) attributes {dimension_semantics = [#tpu.dimension_semantics<parallel>, #tpu.dimension_semantics<arbitrary>], iteration_bounds = array<i64: 1, 1>, scalar_prefetch = 0 : i64, scratch_operands = 1 : i64, tpu.core_type = #tpu.core_type<tc>, window_params = [{transform_indices = @transform_0, window_bounds = array<i64: 2, 128>}, {transform_indices = @transform_1, window_bounds = array<i64: 2, 128>}, {transform_indices = @transform_2, window_bounds = array<i64: 1, 1>}]} {
    %c0_i32 = arith.constant 0 : i32
    %0 = arith.cmpi eq, %arg1, %c0_i32 : i32
    %1 = arith.extui %0 : i1 to i32
    %c0_i32_0 = arith.constant 0 : i32
    %2 = arith.cmpi ne, %1, %c0_i32_0 : i32
    scf.if %2 {
      %cst_25 = arith.constant 0.000000e+00 : f32
      %73 = vector.broadcast %cst_25 : f32 to vector<2x1xf32>
      %c0_26 = arith.constant 0 : index
      %c0_27 = arith.constant 0 : index
      %74 = vector.load %arg5[%c0_26, %c0_27] : memref<2x1xf32, #tpu.memory_space<vmem>>, vector<2x1xf32>
      tpu.vector_store %arg5[%c0_26, %c0_27], %73 {strides = array<i32>} : memref<2x1xf32, #tpu.memory_space<vmem>>, vector<2x1xf32>,
    } else {
    }
    %c0 = arith.constant 0 : index
    %c0_1 = arith.constant 0 : index
    %3 = vector.load %arg2[%c0, %c0_1] : memref<2x128xf32, #tpu.memory_space<vmem>>, vector<2x128xf32>
    %c0_2 = arith.constant 0 : index
    %c0_3 = arith.constant 0 : index
    %4 = vector.load %arg3[%c0_2, %c0_3] : memref<2x128xf32, #tpu.memory_space<vmem>>, vector<2x128xf32>
    %5 = arith.mulf %3, %4 : vector<2x128xf32>
    %6 = arith.mulf %3, %3 : vector<2x128xf32>
    %7 = arith.mulf %4, %4 : vector<2x128xf32>
    %8 = vector.extract_strided_slice %5 {offsets = [0, 0], sizes = [2, 32], strides = [1, 1]} : vector<2x128xf32> to vector<2x32xf32>
    %cst = arith.constant dense<0.000000e+00> : vector<2xf32>
    %9 = vector.multi_reduction <add>, %8, %cst [1] : vector<2x32xf32> to vector<2xf32>
    %10 = vector.shape_cast %9 : vector<2xf32> to vector<2x1xf32>
    %11 = vector.extract_strided_slice %6 {offsets = [0, 0], sizes = [2, 32], strides = [1, 1]} : vector<2x128xf32> to vector<2x32xf32>
    %cst_4 = arith.constant dense<0.000000e+00> : vector<2xf32>
    %12 = vector.multi_reduction <add>, %11, %cst_4 [1] : vector<2x32xf32> to vector<2xf32>
    %13 = vector.shape_cast %12 : vector<2xf32> to vector<2x1xf32>
    %14 = vector.extract_strided_slice %7 {offsets = [0, 0], sizes = [2, 32], strides = [1, 1]} : vector<2x128xf32> to vector<2x32xf32>
    %cst_5 = arith.constant dense<0.000000e+00> : vector<2xf32>
    %15 = vector.multi_reduction <add>, %14, %cst_5 [1] : vector<2x32xf32> to vector<2xf32>
    %16 = vector.shape_cast %15 : vector<2xf32> to vector<2x1xf32>
    %17 = arith.mulf %13, %16 : vector<2x1xf32>
    %cst_6 = arith.constant 1.000000e-16 : f32
    %18 = vector.broadcast %cst_6 : f32 to vector<2x1xf32>
    %19 = arith.maximumf %17, %18 : vector<2x1xf32>
    %20 = math.rsqrt %19 : vector<2x1xf32>
    %21 = arith.mulf %10, %20 : vector<2x1xf32>
    %22 = vector.extract_strided_slice %5 {offsets = [0, 32], sizes = [2, 32], strides = [1, 1]} : vector<2x128xf32> to vector<2x32xf32>
    %cst_7 = arith.constant dense<0.000000e+00> : vector<2xf32>
    %23 = vector.multi_reduction <add>, %22, %cst_7 [1] : vector<2x32xf32> to vector<2xf32>
    %24 = vector.shape_cast %23 : vector<2xf32> to vector<2x1xf32>
    %25 = vector.extract_strided_slice %6 {offsets = [0, 32], sizes = [2, 32], strides = [1, 1]} : vector<2x128xf32> to vector<2x32xf32>
    %cst_8 = arith.constant dense<0.000000e+00> : vector<2xf32>
    %26 = vector.multi_reduction <add>, %25, %cst_8 [1] : vector<2x32xf32> to vector<2xf32>
    %27 = vector.shape_cast %26 : vector<2xf32> to vector<2x1xf32>
    %28 = vector.extract_strided_slice %7 {offsets = [0, 32], sizes = [2, 32], strides = [1, 1]} : vector<2x128xf32> to vector<2x32xf32>
    %cst_9 = arith.constant dense<0.000000e+00> : vector<2xf32>
    %29 = vector.multi_reduction <add>, %28, %cst_9 [1] : vector<2x32xf32> to vector<2xf32>
    %30 = vector.shape_cast %29 : vector<2xf32> to vector<2x1xf32>
    %31 = arith.mulf %27, %30 : vector<2x1xf32>
    %cst_10 = arith.constant 1.000000e-16 : f32
    %32 = vector.broadcast %cst_10 : f32 to vector<2x1xf32>
    %33 = arith.maximumf %31, %32 : vector<2x1xf32>
    %34 = math.rsqrt %33 : vector<2x1xf32>
    %35 = arith.mulf %24, %34 : vector<2x1xf32>
    %36 = arith.addf %21, %35 : vector<2x1xf32>
    %37 = vector.extract_strided_slice %5 {offsets = [0, 64], sizes = [2, 32], strides = [1, 1]} : vector<2x128xf32> to vector<2x32xf32>
    %cst_11 = arith.constant dense<0.000000e+00> : vector<2xf32>
    %38 = vector.multi_reduction <add>, %37, %cst_11 [1] : vector<2x32xf32> to vector<2xf32>
    %39 = vector.shape_cast %38 : vector<2xf32> to vector<2x1xf32>
    %40 = vector.extract_strided_slice %6 {offsets = [0, 64], sizes = [2, 32], strides = [1, 1]} : vector<2x128xf32> to vector<2x32xf32>
    %cst_12 = arith.constant dense<0.000000e+00> : vector<2xf32>
    %41 = vector.multi_reduction <add>, %40, %cst_12 [1] : vector<2x32xf32> to vector<2xf32>
    %42 = vector.shape_cast %41 : vector<2xf32> to vector<2x1xf32>
    %43 = vector.extract_strided_slice %7 {offsets = [0, 64], sizes = [2, 32], strides = [1, 1]} : vector<2x128xf32> to vector<2x32xf32>
    %cst_13 = arith.constant dense<0.000000e+00> : vector<2xf32>
    %44 = vector.multi_reduction <add>, %43, %cst_13 [1] : vector<2x32xf32> to vector<2xf32>
    %45 = vector.shape_cast %44 : vector<2xf32> to vector<2x1xf32>
    %46 = arith.mulf %42, %45 : vector<2x1xf32>
    %cst_14 = arith.constant 1.000000e-16 : f32
    %47 = vector.broadcast %cst_14 : f32 to vector<2x1xf32>
    %48 = arith.maximumf %46, %47 : vector<2x1xf32>
    %49 = math.rsqrt %48 : vector<2x1xf32>
    %50 = arith.mulf %39, %49 : vector<2x1xf32>
    %51 = arith.addf %36, %50 : vector<2x1xf32>
    %52 = vector.extract_strided_slice %5 {offsets = [0, 96], sizes = [2, 32], strides = [1, 1]} : vector<2x128xf32> to vector<2x32xf32>
    %cst_15 = arith.constant dense<0.000000e+00> : vector<2xf32>
    %53 = vector.multi_reduction <add>, %52, %cst_15 [1] : vector<2x32xf32> to vector<2xf32>
    %54 = vector.shape_cast %53 : vector<2xf32> to vector<2x1xf32>
    %55 = vector.extract_strided_slice %6 {offsets = [0, 96], sizes = [2, 32], strides = [1, 1]} : vector<2x128xf32> to vector<2x32xf32>
    %cst_16 = arith.constant dense<0.000000e+00> : vector<2xf32>
    %56 = vector.multi_reduction <add>, %55, %cst_16 [1] : vector<2x32xf32> to vector<2xf32>
    %57 = vector.shape_cast %56 : vector<2xf32> to vector<2x1xf32>
    %58 = vector.extract_strided_slice %7 {offsets = [0, 96], sizes = [2, 32], strides = [1, 1]} : vector<2x128xf32> to vector<2x32xf32>
    %cst_17 = arith.constant dense<0.000000e+00> : vector<2xf32>
    %59 = vector.multi_reduction <add>, %58, %cst_17 [1] : vector<2x32xf32> to vector<2xf32>
    %60 = vector.shape_cast %59 : vector<2xf32> to vector<2x1xf32>
    %61 = arith.mulf %57, %60 : vector<2x1xf32>
    %cst_18 = arith.constant 1.000000e-16 : f32
    %62 = vector.broadcast %cst_18 : f32 to vector<2x1xf32>
    %63 = arith.maximumf %61, %62 : vector<2x1xf32>
    %64 = math.rsqrt %63 : vector<2x1xf32>
    %65 = arith.mulf %54, %64 : vector<2x1xf32>
    %66 = arith.addf %51, %65 : vector<2x1xf32>
    %c0_19 = arith.constant 0 : index
    %c0_20 = arith.constant 0 : index
    %67 = vector.load %arg5[%c0_19, %c0_20] : memref<2x1xf32, #tpu.memory_space<vmem>>, vector<2x1xf32>
    %68 = arith.addf %67, %66 : vector<2x1xf32>
    %c0_21 = arith.constant 0 : index
    %c0_22 = arith.constant 0 : index
    %69 = vector.load %arg5[%c0_21, %c0_22] : memref<2x1xf32, #tpu.memory_space<vmem>>, vector<2x1xf32>
    tpu.vector_store %arg5[%c0_21, %c0_22], %68 {strides = array<i32>} : memref<2x1xf32, #tpu.memory_space<vmem>>, vector<2x1xf32>,
    %c0_i32_23 = arith.constant 0 : i32
    %70 = arith.cmpi eq, %arg1, %c0_i32_23 : i32
    %71 = arith.extui %70 : i1 to i32
    %c0_i32_24 = arith.constant 0 : i32
    %72 = arith.cmpi ne, %71, %c0_i32_24 : i32
    scf.if %72 {
      %c0_25 = arith.constant 0 : index
      %c0_26 = arith.constant 0 : index
      %73 = vector.load %arg5[%c0_25, %c0_26] : memref<2x1xf32, #tpu.memory_space<vmem>>, vector<2x1xf32>
      %74 = vector.shape_cast %73 : vector<2x1xf32> to vector<1x2x1xf32>
      %cst_27 = arith.constant dense<0.000000e+00> : vector<1xf32>
      %75 = vector.multi_reduction <add>, %74, %cst_27 [1, 2] : vector<1x2x1xf32> to vector<1xf32>
      %76 = vector.shape_cast %75 : vector<1xf32> to vector<1x1x1xf32>
      %77 = vector.extract %76[0, 0, 0] : f32 from vector<1x1x1xf32>
      %78 = vector.broadcast %77 : f32 to vector<1x1xf32>
      %cst_28 = arith.constant -2.500000e-01 : f32
      %79 = vector.broadcast %cst_28 : f32 to vector<1x1xf32>
      %80 = arith.mulf %78, %79 : vector<1x1xf32>
      %c0_29 = arith.constant 0 : index
      %c0_30 = arith.constant 0 : index
      %81 = vector.load %arg4[%c0_29, %c0_30] : memref<1x1xf32, #tpu.memory_space<vmem>>, vector<1x1xf32>
      tpu.vector_store %arg4[%c0_29, %c0_30], %80 {strides = array<i32>} : memref<1x1xf32, #tpu.memory_space<vmem>>, vector<1x1xf32>,
    } else {
    }
    return
  }
  func.func @transform_0(%arg0: i32, %arg1: i32) -> (i32, i32) {
    %c1_i32 = arith.constant 1 : i32
    %0 = arith.muli %arg0, %c1_i32 : i32
    %1 = arith.addi %0, %arg1 : i32
    %c0_i32 = arith.constant 0 : i32
    %c0_i32_0 = arith.constant 0 : i32
    return %1, %c0_i32 : i32, i32
  }
  func.func @transform_1(%arg0: i32, %arg1: i32) -> (i32, i32) {
    %c1_i32 = arith.constant 1 : i32
    %0 = arith.muli %arg0, %c1_i32 : i32
    %1 = arith.addi %0, %arg1 : i32
    %c0_i32 = arith.constant 0 : i32
    %c0_i32_0 = arith.constant 0 : i32
    return %1, %c0_i32 : i32, i32
  }
  func.func @transform_2(%arg0: i32, %arg1: i32) -> (i32, i32) {
    %c0_i32 = arith.constant 0 : i32
    %c0_i32_0 = arith.constant 0 : i32
    return %arg0, %c0_i32 : i32, i32
  }
}

</mosaic_0001>

<llo_original>
// kernel: tpu_custom_call.1
$region0: #{tpu_custom_call.1}
  #allocation0 [shape = 'u32[]', space=smem, size = 0x4, offset = 0x4, fixed_abs, tag = 'smem constant byte address 0x4 - core index']
  #allocation1 [shape = 'u32[144,128]{1,0:T(1,128)}', space=vmem, size = 0x12000, scoped, tag = 'internal scratch']
  #allocation2 [shape = 'f32[2,1]{1,0:T(2,128)}', space=vmem, size = 0x400, scoped, tag = 'scratch operand']
  %s0 = inlined_call_operand.hbm [shape: f32[2,128], index: 0, kind: input, shape index: {}]
  %s1 = inlined_call_operand.vmem [shape: f32[2,128], index: 1, kind: input, shape index: {}]
  %s2 = inlined_call_operand.hbm [shape: f32[1,1], index: 2, kind: output, shape index: {}]
  %s3 = sld [smem:[#allocation0]]
  $region30: #{tpu_custom_call.1} parent=0
    _
  %s5 = ssub.s32 1, %s3
  %s6 = scalar_select 0, %s5, %s3
  $region1: #{tpu_custom_call.1} parent=0
    #allocation3 [shape = 'u8[1024]{0}', space=vmem, size = 0x400, scoped, tag = 'input window, operand 0, single buffered']
    #allocation4 [shape = 's32[1]{0}', space=sflag, size = 0x4, scoped, tag = 'scoped memory for tpu_custom_call.1']
    #allocation5 [shape = 's32[1]{0}', space=sflag, size = 0x4, scoped, tag = 'scoped memory for tpu_custom_call.1']
    #allocation6 [shape = 'u8[512]{0}', space=vmem, size = 0x400, scoped, tag = 'output window, operand 0, single buffered']
    %7 = vsyncpa [#allocation4], 0
    %8 = vsyncpa [#allocation5], 0
    // Predicated region
    $region2: #{tpu_custom_call.1} parent=1 // pred_check
      _
    $region3: #{tpu_custom_call.1} parent=1 // pred_check_branch
      %10 = sbr.rel (0) target = $region5
    $region4: #{tpu_custom_call.1} parent=1 // pred_region
      %s11 = sadd.s32 0, 0
      %s13 = ssub.s32 32, 32
      %14 = vsyncadd [#allocation4], %s13
      %s15 = smul.addr %s11, 32
      %s16 = scalar_lea.hbm %s0, %s15
      %s18 = sshll.u32 [#allocation3], 4
      %s19 = int_to_ptr.vmem [resolvable:$true] %s18
      %21 = dma.hbm_to_vmem [thread:$0]  %s16, 32, %s19, [#allocation4]
    $region5: #{tpu_custom_call.1} parent=1 // pred_fallthru
      _
    // Predicated region
    $region6: #{tpu_custom_call.1} parent=1 // pred_check
      _
    $region7: #{tpu_custom_call.1} parent=1 // pred_check_branch
      %23 = sbr.rel (0) target = $region9
    $region8: #{tpu_custom_call.1} parent=1 // pred_region
      %s24 = sadd.s32 0, 0
      %p25 = scmp.lt.s32.totalorder %s24, 0
      %s26 = scalar_select %p25, %s24, 0
      %s27 = smul.addr %s26, 2
      %s28 = scalar_lea.vmem %s1, %s27
      %s29 = sadd.s32 0, 0
    $region9: #{tpu_custom_call.1} parent=1 // pred_fallthru
      _
    // Predicated region
    $region10: #{tpu_custom_call.1} parent=1 // pred_check
      _
    $region11: #{tpu_custom_call.1} parent=1 // pred_check_branch
      %31 = sbr.rel (0) target = $region13
    $region12: #{tpu_custom_call.1} parent=1 // pred_region
      %32 = dma.done [#allocation4], 32
    $region13: #{tpu_custom_call.1} parent=1 // pred_fallthru
      _
    %s33 = sadd.s32 0, 0
    %p34 = scmp.lt.s32.totalorder %s33, 0
    %s35 = scalar_select %p34, %s33, 0
    %s36 = smul.addr %s35, 2
    %s37 = scalar_lea.vmem %s1, %s36
    %s38 = sadd.s32 0, 0
    %s39 = sadd.s32 0, 0
    %p40 = scmp.lt.s32.totalorder %s39, 0
    %s41 = scalar_select %p40, %s39, 0
    %s42 = smul.addr %s41, 2
    %s43 = scalar_lea.vmem %s1, %s42
    %s44 = sadd.s32 0, 0
    %p45 = scmp.eq.s32.totalorder 0, 0
    // Predicated region
    $region14: #{tpu_custom_call.1} parent=1 // pred_check
      %p46 = pneg %p45
    $region15: #{tpu_custom_call.1} parent=1 // pred_check_branch
      %48 = sbr.rel (%p46) target = $region17
    $region16: #{tpu_custom_call.1} parent=1 // pred_region
      %vm49 = vcmask 1024
      %50 = vst.msk [vmem:[#allocation2] sm:$0x3] %vm49, 0.0
    $region17: #{tpu_custom_call.1} parent=1 // pred_fallthru
      _
    %v51 = vld [vmem:[#allocation3] sm:$0x3]
    %v52 = vld [vmem:[%s43] sm:$0x3]
    %v53 = vmul.f32 %v51, %v52
    %v54 = vmul.f32 %v51, %v51
    %v55 = vmul.f32 %v52, %v52
    %vm56 = vcmask 254976
    %v57 = vsel %vm56, %v53, 0.0
    %58 = vadd.xlane.f32.xlu0 %v57
    %v59 = vpop.xlane.xlu0 %58
    %v60 = vsel %vm56, %v54, 0.0
    %61 = vadd.xlane.f32.xlu0 %v60
    %v62 = vpop.xlane.xlu0 %61
    %v63 = vsel %vm56, %v55, 0.0
    %64 = vadd.xlane.f32.xlu0 %v63
    %v65 = vpop.xlane.xlu0 %64
    %v66 = vmul.f32 %v62, %v65
    %v67 = vmax.f32 %v66, 1e-16
    %v68 = vrsqrt.pop %v67
    %v69 = vmul.f32 %v59, %v68
    %71 = vrot.lane.b32.xlu0 %v53, 96
    %v72 = vpop.permute.xlu0 %71
    %v74 = vsel %vm56, %v72, 0.0
    %75 = vadd.xlane.f32.xlu0 %v74
    %v76 = vpop.xlane.xlu0 %75
    %78 = vrot.lane.b32.xlu0 %v54, 96
    %v79 = vpop.permute.xlu0 %78
    %v81 = vsel %vm56, %v79, 0.0
    %82 = vadd.xlane.f32.xlu0 %v81
    %v83 = vpop.xlane.xlu0 %82
    %85 = vrot.lane.b32.xlu0 %v55, 96
    %v86 = vpop.permute.xlu0 %85
    %v88 = vsel %vm56, %v86, 0.0
    %89 = vadd.xlane.f32.xlu0 %v88
    %v90 = vpop.xlane.xlu0 %89
    %v91 = vmul.f32 %v83, %v90
    %v92 = vmax.f32 %v91, 1e-16
    %v93 = vrsqrt.pop %v92
    %v94 = vmul.f32 %v76, %v93
    %v95 = vadd.f32 %v69, %v94
    %96 = vrot.lane.b32.xlu0 %v53, 64
    %v97 = vpop.permute.xlu0 %96
    %v99 = vsel %vm56, %v97, 0.0
    %100 = vadd.xlane.f32.xlu0 %v99
    %v101 = vpop.xlane.xlu0 %100
    %102 = vrot.lane.b32.xlu0 %v54, 64
    %v103 = vpop.permute.xlu0 %102
    %v105 = vsel %vm56, %v103, 0.0
    %106 = vadd.xlane.f32.xlu0 %v105
    %v107 = vpop.xlane.xlu0 %106
    %108 = vrot.lane.b32.xlu0 %v55, 64
    %v109 = vpop.permute.xlu0 %108
    %v111 = vsel %vm56, %v109, 0.0
    %112 = vadd.xlane.f32.xlu0 %v111
    %v113 = vpop.xlane.xlu0 %112
    %v114 = vmul.f32 %v107, %v113
    %v115 = vmax.f32 %v114, 1e-16
    %v116 = vrsqrt.pop %v115
    %v117 = vmul.f32 %v101, %v116
    %v118 = vadd.f32 %v95, %v117
    %119 = vrot.lane.b32.xlu0 %v53, 32
    %v120 = vpop.permute.xlu0 %119
    %v122 = vsel %vm56, %v120, 0.0
    %123 = vadd.xlane.f32.xlu0 %v122
    %v124 = vpop.xlane.xlu0 %123
    %125 = vrot.lane.b32.xlu0 %v54, 32
    %v126 = vpop.permute.xlu0 %125
    %v128 = vsel %vm56, %v126, 0.0
    %129 = vadd.xlane.f32.xlu0 %v128
    %v130 = vpop.xlane.xlu0 %129
    %131 = vrot.lane.b32.xlu0 %v55, 32
    %v132 = vpop.permute.xlu0 %131
    %v134 = vsel %vm56, %v132, 0.0
    %135 = vadd.xlane.f32.xlu0 %v134
    %v136 = vpop.xlane.xlu0 %135
    %v137 = vmul.f32 %v130, %v136
    %v138 = vmax.f32 %v137, 1e-16
    %v139 = vrsqrt.pop %v138
    %v140 = vmul.f32 %v124, %v139
    %v141 = vadd.f32 %v118, %v140
    %v142 = vld [vmem:[#allocation2] sm:$0x3]
    %v143 = vadd.f32 %v142, %v141
    %vm144 = vcmask 1024
    %145 = vst.msk [vmem:[#allocation2] sm:$0x3] %vm144, %v143
    // Predicated region
    $region18: #{tpu_custom_call.1} parent=1 // pred_check
      %p146 = pneg %p45
    $region19: #{tpu_custom_call.1} parent=1 // pred_check_branch
      %148 = sbr.rel (%p146) target = $region21
    $region20: #{tpu_custom_call.1} parent=1 // pred_region
      %v149 = vld [vmem:[#allocation2] sm:$0x3]
      %v150 = vsel %vm144, %v149, 0.0
      %151 = vadd.xlane.f32.xlu0 %v150
      %v152 = vpop.xlane.xlu0 %151
      %v153 = vrot.slane %v152, 4
      %v154 = vadd.f32 %v152, %v153
      %v155 = vrot.slane %v154, 2
      %v156 = vadd.f32 %v154, %v155
      %v157 = vrot.slane %v156, 1
      %v158 = vadd.f32 %v156, %v157
      %s159 = vtos %v158
      %v160 = vstv %s159
      %v161 = vmul.f32 %v160, -0.25
      %vm162 = vcmask 0
      %163 = vst.msk [vmem:[#allocation6] sm:$0x1] %vm162, %v161
    $region21: #{tpu_custom_call.1} parent=1 // pred_fallthru
      _
    // Predicated region
    $region22: #{tpu_custom_call.1} parent=1 // pred_check
      _
    $region23: #{tpu_custom_call.1} parent=1 // pred_check_branch
      %165 = sbr.rel (0) target = $region25
    $region24: #{tpu_custom_call.1} parent=1 // pred_region
      %s167 = ssub.s32 16, 16
      %168 = vsyncadd [#allocation5], %s167
      %s170 = sshll.u32 [#allocation6], 4
      %s171 = int_to_ptr.vmem [resolvable:$true] %s170
      %173 = dma.vmem_to_hbm [thread:$0]  %s171, 16, %s2, [#allocation5]
    $region25: #{tpu_custom_call.1} parent=1 // pred_fallthru
      _
    // Predicated region
    $region26: #{tpu_custom_call.1} parent=1 // pred_check
      _
    $region27: #{tpu_custom_call.1} parent=1 // pred_check_branch
      %175 = sbr.rel (0) target = $region29
    $region28: #{tpu_custom_call.1} parent=1 // pred_region
      %176 = dma.done [#allocation5], 16
    $region29: #{tpu_custom_call.1} parent=1 // pred_fallthru
      _
    %177 = vsyncpa [#allocation4], 1
    %178 = vsyncpa [#allocation5], 1

</llo_original>
